<compile_context>
chip_gen: v6e
topology: v6e:2x2x1
jax: 0.10.0
libtpu: 0.0.40
codegen_flags: <defaults>
</compile_context>

<pallas_src>
import functools

import jax
import jax.numpy as jnp
from jax import lax
from jax.experimental import pallas as pl
from jax.experimental.pallas import tpu as pltpu


def _fused_attention_kernel(p_ref, w_ref, b_ref, s_ref, *, B, n_heads, E, P):
    """Fused patch-embed + per-head attention, one invocation, all VMEM-resident.

    p_ref: (K, B*P)   im2col patches; (batch, patch) packed on the lane axis
    w_ref: (F, K)     conv weight flattened (F = n_heads * E)
    b_ref: (F, 1)     conv bias as a column (broadcasts over the lane axis)
    s_ref: (B, P, F)  lane-dense output; heads packed on the last axis
    """
    w_bf = w_ref[...].astype(jnp.bfloat16)
    p_bf = p_ref[...].astype(jnp.bfloat16)
    # Single batched patch-embed matmul over ALL batches:
    #   (F, K) @ (K, B*P) -> (F, B*P), f32 accumulation, + bias broadcast.
    xb = jnp.dot(w_bf, p_bf, preferred_element_type=jnp.float32) + b_ref[...]

    # Static unroll over B * n_heads (= 4 here): a handful of tiny MXU dots
    # beats 4 grid steps of pipeline overhead.
    # TODO(synk): if B*n_heads grows, switch to lax.fori_loop(unroll=True) with
    # head-batched lax.dot_general (batch dims) to keep vreg pressure flat.
    for b in range(B):
        head_out = []
        for h in range(n_heads):
            # (E, P) head slice == key == value (sublane-aligned: E == 8).
            xh_bf = xb[h * E:(h + 1) * E, b * P:(b + 1) * P].astype(jnp.bfloat16)
            # weights[p, r] = sum_e xh[e, p] * xh[e, r]        (query @ key)
            # Transposed contraction is absorbed by the MXU (no XLU vxpose).
            wts = lax.dot_general(
                xh_bf, xh_bf, (((0,), (0,)), ((), ())),
                preferred_element_type=jnp.float32)             # (P, P) f32
            # s[p, e] = sum_r wts[p, r] * xh[e, r]             (weights @ value^T)
            s = lax.dot_general(
                wts.astype(jnp.bfloat16), xh_bf, (((1,), (1,)), ((), ())),
                preferred_element_type=jnp.float32)             # (P, E) f32
            head_out.append(s)
        # One lane-dense (P, n_heads*E) store per batch instead of per-head
        # 8-lane masked stores.
        s_ref[b] = jnp.concatenate(head_out, axis=-1).astype(s_ref.dtype)


def self_attention_forward(x, conv_w, conv_b, *, patch_size, n_heads):
    B, C, H, W = x.shape
    ps = patch_size
    F = conv_w.shape[0]
    E = F // n_heads
    Hp, Wp = H // ps, W // ps
    P = Hp * Wp
    K = C * ps * ps

    # Host-side im2col for the stride==kernel conv, laid out (K, B*P):
    #   K flattened in (c, kh, kw) order to match the PyTorch conv weight,
    #   lane axis in (b, ph, pw) order so columns b*P:(b+1)*P are batch b's
    #   patches in PyTorch's flatten order.
    # TODO(synk): at realistic C/H/W fold this permute into the kernel (pass x
    # with memory_space=pl.ANY + an (Hp,Wp) index_map / strided DMA) to avoid
    # an extra full HBM read+write of x before the pallas_call.
    patches = x.reshape(B, C, Hp, ps, Wp, ps).transpose(1, 3, 5, 0, 2, 4)
    patches = patches.reshape(K, B * P)
    w_mat = conv_w.reshape(F, K)
    b_col = conv_b.reshape(F, 1)

    flops = 2 * F * K * B * P + 4 * B * n_heads * P * P * E
    bytes_accessed = 4 * (patches.size + w_mat.size + b_col.size + B * P * F)

    kernel = functools.partial(
        _fused_attention_kernel, B=B, n_heads=n_heads, E=E, P=P)

    s_packed = pl.pallas_call(
        kernel,
        out_shape=jax.ShapeDtypeStruct((B, P, F), x.dtype),
        in_specs=[pl.BlockSpec(memory_space=pltpu.MemorySpace.VMEM)] * 3,
        out_specs=pl.BlockSpec(memory_space=pltpu.MemorySpace.VMEM),
        cost_estimate=pl.CostEstimate(
            flops=flops, transcendentals=0, bytes_accessed=bytes_accessed),
        compiler_params=pltpu.CompilerParams(
            # Footprint here is <1 MiB; set the limit explicitly so it is
            # valid on v7x (64 MiB VMEM/TC) as well as v5e/v6e (128 MiB).
            vmem_limit_bytes=16 * 1024 * 1024),
    )(patches, w_mat, b_col)

    # Restore the PyTorch layout (B, n_heads, P, E) from the lane-dense
    # (B, P, n_heads*E) kernel output.
    s = s_packed.reshape(B, P, n_heads, E).transpose(0, 2, 1, 3)
    return s


if __name__ == "__main__":
    # Module hyperparameters (small, consistent with the forward).
    patch_size, in_channels, patch_embed, out_embed, n_heads = 4, 4, 8, 16, 2
    B, H, W = 2, 16, 16
    F = patch_embed * n_heads

    key = jax.random.PRNGKey(0)
    k1, k2, k3, k4, k5 = jax.random.split(key, 5)
    x = jax.random.normal(k1, (B, in_channels, H, W), jnp.float32)
    conv_w = 0.1 * jax.random.normal(
        k2, (F, in_channels, patch_size, patch_size), jnp.float32)
    conv_b = 0.1 * jax.random.normal(k3, (F,), jnp.float32)
    # out_linear_layer params: defined in __init__ but unused in forward.
    lin_w = 0.1 * jax.random.normal(k4, (out_embed, patch_embed), jnp.float32)
    lin_b = 0.1 * jax.random.normal(k5, (out_embed,), jnp.float32)

    s = self_attention_forward(
        x, conv_w, conv_b, patch_size=patch_size, n_heads=n_heads)
    s = jax.block_until_ready(s)

    # ---- Reference 1: independent pure-JAX full-f32 path (conv-based). ----
    emb = lax.conv_general_dilated(
        x, conv_w, (patch_size, patch_size), "VALID",
        dimension_numbers=("NCHW", "OIHW", "NCHW"))
    emb = emb + conv_b[None, :, None, None]
    Bc, Fc, Hp, Wp = emb.shape
    E = Fc // n_heads
    P = Hp * Wp
    xh = emb.reshape(Bc, n_heads, E, P)                        # (B, H, E, P)
    q = jnp.transpose(xh, (0, 1, 3, 2))                        # (B, H, P, E)
    wts = q @ xh                                               # (B, H, P, P)
    s_f32 = wts @ jnp.transpose(xh, (0, 1, 3, 2))              # (B, H, P, E)

    # ---- Reference 2: jnp emulation of the kernel's bf16-MXU numerics. ----
    K = in_channels * patch_size * patch_size
    patches = x.reshape(B, in_channels, Hp, patch_size, Wp, patch_size)
    patches = patches.transpose(1, 3, 5, 0, 2, 4).reshape(K, B * P)
    w_bf = conv_w.reshape(F, K).astype(jnp.bfloat16)
    p_bf = patches.astype(jnp.bfloat16)
    xb = jnp.dot(w_bf, p_bf, preferred_element_type=jnp.float32) + conv_b[:, None]
    s_bf16 = jnp.zeros_like(s_f32)
    for b in range(B):
        for h in range(n_heads):
            xh_bh = xb[h * E:(h + 1) * E, b * P:(b + 1) * P].astype(jnp.bfloat16)
            w_bh = lax.dot_general(xh_bh, xh_bh, (((0,), (0,)), ((), ())),
                                   preferred_element_type=jnp.float32)
            s_bh = lax.dot_general(w_bh.astype(jnp.bfloat16), xh_bh,
                                   (((1,), (1,)), ((), ())),
                                   preferred_element_type=jnp.float32)
            s_bf16 = s_bf16.at[b, h].set(s_bh)

    assert s.shape == s_f32.shape, (s.shape, s_f32.shape)
    # Tight check: the kernel must reproduce the same bf16-input / f32-accum
    # math (both run on the MXU, so differences are accumulation-order noise).
    assert jnp.allclose(s, s_bf16, rtol=5e-3, atol=5e-3), float(
        jnp.max(jnp.abs(s - s_bf16)))
    # Sanity check vs full f32: bf16 MXU inputs on the un-normalized
    # (q@k)@v^T values introduce ~0.5-2%-of-max error; gate at 5% of max|s|.
    rel = float(jnp.max(jnp.abs(s - s_f32)) / jnp.max(jnp.abs(s_f32)))
    assert rel < 5e-2, rel
    print("KERNEL_OK")
</pallas_src>

<mosaic_0001>
module attributes {stable_mosaic.version = 11 : i64} {
  func.func @_fused_attention_kernel(%arg0: memref<64x32xf32, #tpu.memory_space<vmem>>, %arg1: memref<16x64xf32, #tpu.memory_space<vmem>>, %arg2: memref<16x1xf32, #tpu.memory_space<vmem>>, %arg3: memref<2x16x16xf32, #tpu.memory_space<vmem>>) attributes {dimension_semantics = [], scalar_prefetch = 0 : i64, scratch_operands = 0 : i64, tpu.core_type = #tpu.core_type<tc>} {
    %c0 = arith.constant 0 : index
    %c0_0 = arith.constant 0 : index
    %0 = vector.load %arg1[%c0, %c0_0] : memref<16x64xf32, #tpu.memory_space<vmem>>, vector<16x64xf32>
    %1 = arith.truncf %0 : vector<16x64xf32> to vector<16x64xbf16>
    %c0_1 = arith.constant 0 : index
    %c0_2 = arith.constant 0 : index
    %2 = vector.load %arg0[%c0_1, %c0_2] : memref<64x32xf32, #tpu.memory_space<vmem>>, vector<64x32xf32>
    %3 = arith.truncf %2 : vector<64x32xf32> to vector<64x32xbf16>
    %cst = arith.constant dense<0.000000e+00> : vector<16x32xf32>
    %4 = tpu.matmul %1, %3, %cst {dimension_numbers = #tpu.dot_dimension_numbers<[1], [0], [0], [1], [0, 0, 1, 1], [], []>} : vector<16x64xbf16>, vector<64x32xbf16>, vector<16x32xf32> -> vector<16x32xf32>
    %c0_3 = arith.constant 0 : index
    %c0_4 = arith.constant 0 : index
    %5 = vector.load %arg2[%c0_3, %c0_4] : memref<16x1xf32, #tpu.memory_space<vmem>>, vector<16x1xf32>
    %6 = vector.broadcast %5 : vector<16x1xf32> to vector<16x32xf32>
    %7 = arith.addf %4, %6 : vector<16x32xf32>
    %8 = vector.extract_strided_slice %7 {offsets = [0, 0], sizes = [8, 16], strides = [1, 1]} : vector<16x32xf32> to vector<8x16xf32>
    %9 = arith.truncf %8 : vector<8x16xf32> to vector<8x16xbf16>
    %cst_5 = arith.constant dense<0.000000e+00> : vector<16x16xf32>
    %10 = tpu.matmul %9, %9, %cst_5 {dimension_numbers = #tpu.dot_dimension_numbers<[0], [0], [1], [1], [0, 1, 1, 1], [], []>} : vector<8x16xbf16>, vector<8x16xbf16>, vector<16x16xf32> -> vector<16x16xf32>
    %11 = arith.truncf %10 : vector<16x16xf32> to vector<16x16xbf16>
    %cst_6 = arith.constant dense<0.000000e+00> : vector<16x8xf32>
    %12 = tpu.matmul %11, %9, %cst_6 {dimension_numbers = #tpu.dot_dimension_numbers<[1], [1], [0], [0], [0, 0, 1, 0], [], []>} : vector<16x16xbf16>, vector<8x16xbf16>, vector<16x8xf32> -> vector<16x8xf32>
    %13 = vector.extract_strided_slice %7 {offsets = [8, 0], sizes = [8, 16], strides = [1, 1]} : vector<16x32xf32> to vector<8x16xf32>
    %14 = arith.truncf %13 : vector<8x16xf32> to vector<8x16xbf16>
    %cst_7 = arith.constant dense<0.000000e+00> : vector<16x16xf32>
    %15 = tpu.matmul %14, %14, %cst_7 {dimension_numbers = #tpu.dot_dimension_numbers<[0], [0], [1], [1], [0, 1, 1, 1], [], []>} : vector<8x16xbf16>, vector<8x16xbf16>, vector<16x16xf32> -> vector<16x16xf32>
    %16 = arith.truncf %15 : vector<16x16xf32> to vector<16x16xbf16>
    %cst_8 = arith.constant dense<0.000000e+00> : vector<16x8xf32>
    %17 = tpu.matmul %16, %14, %cst_8 {dimension_numbers = #tpu.dot_dimension_numbers<[1], [1], [0], [0], [0, 0, 1, 0], [], []>} : vector<16x16xbf16>, vector<8x16xbf16>, vector<16x8xf32> -> vector<16x8xf32>
    %18 = tpu.concatenate %12, %17 in 1 : vector<16x8xf32>, vector<16x8xf32> -> vector<16x16xf32>
    %c0_9 = arith.constant 0 : index
    %c0_10 = arith.constant 0 : index
    %c0_11 = arith.constant 0 : index
    %19 = vector.load %arg3[%c0_9, %c0_10, %c0_11] : memref<2x16x16xf32, #tpu.memory_space<vmem>>, vector<1x16x16xf32>
    %20 = vector.shape_cast %19 : vector<1x16x16xf32> to vector<16x16xf32>
    %21 = vector.shape_cast %18 : vector<16x16xf32> to vector<1x16x16xf32>
    tpu.vector_store %arg3[%c0_9, %c0_10, %c0_11], %21 {strides = array<i32>} : memref<2x16x16xf32, #tpu.memory_space<vmem>>, vector<1x16x16xf32>,
    %22 = vector.extract_strided_slice %7 {offsets = [0, 16], sizes = [8, 16], strides = [1, 1]} : vector<16x32xf32> to vector<8x16xf32>
    %23 = arith.truncf %22 : vector<8x16xf32> to vector<8x16xbf16>
    %cst_12 = arith.constant dense<0.000000e+00> : vector<16x16xf32>
    %24 = tpu.matmul %23, %23, %cst_12 {dimension_numbers = #tpu.dot_dimension_numbers<[0], [0], [1], [1], [0, 1, 1, 1], [], []>} : vector<8x16xbf16>, vector<8x16xbf16>, vector<16x16xf32> -> vector<16x16xf32>
    %25 = arith.truncf %24 : vector<16x16xf32> to vector<16x16xbf16>
    %cst_13 = arith.constant dense<0.000000e+00> : vector<16x8xf32>
    %26 = tpu.matmul %25, %23, %cst_13 {dimension_numbers = #tpu.dot_dimension_numbers<[1], [1], [0], [0], [0, 0, 1, 0], [], []>} : vector<16x16xbf16>, vector<8x16xbf16>, vector<16x8xf32> -> vector<16x8xf32>
    %27 = vector.extract_strided_slice %7 {offsets = [8, 16], sizes = [8, 16], strides = [1, 1]} : vector<16x32xf32> to vector<8x16xf32>
    %28 = arith.truncf %27 : vector<8x16xf32> to vector<8x16xbf16>
    %cst_14 = arith.constant dense<0.000000e+00> : vector<16x16xf32>
    %29 = tpu.matmul %28, %28, %cst_14 {dimension_numbers = #tpu.dot_dimension_numbers<[0], [0], [1], [1], [0, 1, 1, 1], [], []>} : vector<8x16xbf16>, vector<8x16xbf16>, vector<16x16xf32> -> vector<16x16xf32>
    %30 = arith.truncf %29 : vector<16x16xf32> to vector<16x16xbf16>
    %cst_15 = arith.constant dense<0.000000e+00> : vector<16x8xf32>
    %31 = tpu.matmul %30, %28, %cst_15 {dimension_numbers = #tpu.dot_dimension_numbers<[1], [1], [0], [0], [0, 0, 1, 0], [], []>} : vector<16x16xbf16>, vector<8x16xbf16>, vector<16x8xf32> -> vector<16x8xf32>
    %32 = tpu.concatenate %26, %31 in 1 : vector<16x8xf32>, vector<16x8xf32> -> vector<16x16xf32>
    %c1 = arith.constant 1 : index
    %c0_16 = arith.constant 0 : index
    %c0_17 = arith.constant 0 : index
    %33 = vector.load %arg3[%c1, %c0_16, %c0_17] : memref<2x16x16xf32, #tpu.memory_space<vmem>>, vector<1x16x16xf32>
    %34 = vector.shape_cast %33 : vector<1x16x16xf32> to vector<16x16xf32>
    %35 = vector.shape_cast %32 : vector<16x16xf32> to vector<1x16x16xf32>
    tpu.vector_store %arg3[%c1, %c0_16, %c0_17], %35 {strides = array<i32>} : memref<2x16x16xf32, #tpu.memory_space<vmem>>, vector<1x16x16xf32>,
    return
  }
}

</mosaic_0001>

<llo_original>
// kernel: tpu_custom_call.1
$region0: #{tpu_custom_call.1}
  #allocation0 [shape = 'u32[]', space=smem, size = 0x4, offset = 0x4, fixed_abs, tag = 'smem constant byte address 0x4 - core index']
  #allocation1 [shape = 'u32[144,128]{1,0:T(1,128)}', space=vmem, size = 0x12000, scoped, tag = 'internal scratch']
  %s0 = inlined_call_operand.vmem [shape: f32[64,32], index: 0, kind: input, shape index: {}]
  %s1 = inlined_call_operand.vmem [shape: f32[16,64], index: 1, kind: input, shape index: {}]
  %s2 = inlined_call_operand.vmem [shape: f32[16,1], index: 2, kind: input, shape index: {}]
  %s3 = inlined_call_operand.hbm [shape: f32[2,16,16], index: 3, kind: output, shape index: {}]
  %s4 = sld [smem:[#allocation0]]
  $region22: #{tpu_custom_call.1} parent=0
    _
  %s6 = ssub.s32 1, %s4
  %s7 = scalar_select 0, %s6, %s4
  $region1: #{tpu_custom_call.1} parent=0
    #allocation2 [shape = 'u8[16384]{0}', space=vmem, size = 0x4000, scoped, tag = 'output window, operand 0, single buffered']
    #allocation3 [shape = 's32[1]{0}', space=sflag, size = 0x4, scoped, tag = 'scoped memory for tpu_custom_call.1']
    %8 = vsyncpa [#allocation3], 0
    // Predicated region
    $region2: #{tpu_custom_call.1} parent=1 // pred_check
      _
    $region3: #{tpu_custom_call.1} parent=1 // pred_check_branch
      %10 = sbr.rel (0) target = $region5
    $region4: #{tpu_custom_call.1} parent=1 // pred_region
      _
    $region5: #{tpu_custom_call.1} parent=1 // pred_fallthru
      _
    // Predicated region
    $region6: #{tpu_custom_call.1} parent=1 // pred_check
      _
    $region7: #{tpu_custom_call.1} parent=1 // pred_check_branch
      %12 = sbr.rel (0) target = $region9
    $region8: #{tpu_custom_call.1} parent=1 // pred_region
      _
    $region9: #{tpu_custom_call.1} parent=1 // pred_fallthru
      _
    // Predicated region
    $region10: #{tpu_custom_call.1} parent=1 // pred_check
      _
    $region11: #{tpu_custom_call.1} parent=1 // pred_check_branch
      %14 = sbr.rel (0) target = $region13
    $region12: #{tpu_custom_call.1} parent=1 // pred_region
      _
    $region13: #{tpu_custom_call.1} parent=1 // pred_fallthru
      _
    %v16 = vld [vmem:[%s1] sm:$0xff]
    %v17 = vld [vmem:[%s1 + $0x8] sm:$0xff]
    %v18 = vpack.c.bf16 %v17, %v16
    %v19 = vld [vmem:[%s0] sm:$0xff]
    %v20 = vld [vmem:[%s0 + $0x8] sm:$0xff]
    %v21 = vld [vmem:[%s0 + $0x10] sm:$0xff]
    %v22 = vld [vmem:[%s0 + $0x18] sm:$0xff]
    %v23 = vld [vmem:[%s0 + $0x20] sm:$0xff]
    %v24 = vld [vmem:[%s0 + $0x28] sm:$0xff]
    %v25 = vld [vmem:[%s0 + $0x30] sm:$0xff]
    %v26 = vld [vmem:[%s0 + $0x38] sm:$0xff]
    %v27 = vpack.c.bf16 %v20, %v19
    %v28 = vpack.c.bf16 %v22, %v21
    %v29 = vpack.c.bf16 %v24, %v23
    %v30 = vpack.c.bf16 %v26, %v25
    %v31 = vld [vmem:[%s2] sm:$0xff]
    %v32 = vld [vmem:[%s2 + $0x8] sm:$0xff]
    %34 = vset.pattern.permute.xlu0 0
    %35 = vperm.xlu0 %34, %v31
    %v36 = vpop.permute.xlu0 %35
    %39 = vset.pattern.permute.xlu0 0
    %40 = vperm.xlu0 %39, %v32
    %v41 = vpop.permute.xlu0 %40
    %vm43 = vcmask 523264
    %v45 = vsel %vm43, %v18, 0
    %47 = vmatprep.subr.bf16.mxu0 0
    %48 = vmatpush1.bf16.msra.mxu0 0
    %49 = vmatprep.subr.bf16.mxu0 0
    %50 = vmatpush1.bf16.msra.mxu0 0
    %51 = vmatprep.subr.bf16.mxu0 0
    %52 = vmatpush1.bf16.msra.mxu0 0
    %53 = vmatprep.subr.bf16.mxu0 0
    %54 = vmatpush1.bf16.msra.mxu0 0
    %55 = vmatprep.subr.bf16.mxu0 0
    %56 = vmatpush1.bf16.msra.mxu0 %v30
    %57 = vmatprep.subr.bf16.mxu0 0
    %58 = vmatpush1.bf16.msra.mxu0 %v29
    %59 = vmatprep.subr.bf16.mxu0 0
    %60 = vmatpush1.bf16.msra.mxu0 %v28
    %61 = vmatprep.subr.bf16.mxu0 0
    %62 = vmatpush1.bf16.msra.mxu0 %v27
    %63 = vmatprep.subr.bf16.mxu0 0
    %64 = vmatpush2.bf16.msra.mxu0 0
    %65 = vmatprep.subr.bf16.mxu0 0
    %66 = vmatpush2.bf16.msra.mxu0 0
    %67 = vmatprep.subr.bf16.mxu0 0
    %68 = vmatpush2.bf16.msra.mxu0 0
    %69 = vmatprep.subr.bf16.mxu0 0
    %70 = vmatpush2.bf16.msra.mxu0 0
    %71 = vmatprep.subr.bf16.mxu0 0
    %72 = vmatpush2.bf16.msra.mxu0 0
    %73 = vmatprep.subr.bf16.mxu0 0
    %74 = vmatpush2.bf16.msra.mxu0 0
    %75 = vmatprep.subr.bf16.mxu0 0
    %76 = vmatpush2.bf16.msra.mxu0 0
    %77 = vmatprep.subr.bf16.mxu0 0
    %78 = vmatpush2.bf16.msra.mxu0 0
    %79 = vmatprep.mubr.bf16.mxu0 0
    %80 = vmatmul.mubr.bf16.gmra.mxu0 %v45
    %v81 = vpop.f32.mrf.mxu0
    %v82 = vadd.f32 %v36, %v81
    %v83 = vpop.f32.mrf.mxu0
    %v84 = vpop.f32.mrf.mxu0
    %v85 = vadd.f32 %v41, %v84
    %v86 = vpop.f32.mrf.mxu0
    %87 = vdwg.mxu0
    %v88 = vpack.c.bf16 %v82, %v82
    %89 = vxpose.xlu0.c.b16.start [1/8] %v88, 128
    %90 = vxpose.xlu0.c.b16.cont [2/8] 0, 128
    %91 = vxpose.xlu0.c.b16.cont [3/8] 0, 128
    %92 = vxpose.xlu0.c.b16.cont [4/8] 0, 128
    %93 = vxpose.xlu0.c.b16.cont [5/8] 0, 128
    %94 = vxpose.xlu0.c.b16.cont [6/8] 0, 128
    %95 = vxpose.xlu0.c.b16.cont [7/8] 0, 128
    %96 = vxpose.xlu0.c.b16.end [8/8] 0, 128
    %v97 = vpop.trf.xlu0
    %v98 = vpop.trf.xlu0
    %v99 = vpop.trf.xlu0
    %v100 = vpop.trf.xlu0
    %v101 = vpop.trf.xlu0
    %v102 = vpop.trf.xlu0
    %v103 = vpop.trf.xlu0
    %v104 = vpop.trf.xlu0
    %vm105 = vcmask 64512
    %v107 = vsel %vm105, %v97, 0
    %vm109 = vcmask 1043456
    %v111 = vsel %vm109, %v88, 0
    %113 = vmatprep.subr.bf16.mxu0 0
    %114 = vmatpush1.bf16.msra.mxu0 0
    %115 = vmatprep.subr.bf16.mxu0 0
    %116 = vmatpush1.bf16.msra.mxu0 0
    %117 = vmatprep.subr.bf16.mxu0 0
    %118 = vmatpush1.bf16.msra.mxu0 0
    %119 = vmatprep.subr.bf16.mxu0 0
    %120 = vmatpush1.bf16.msra.mxu0 0
    %121 = vmatprep.subr.bf16.mxu0 0
    %122 = vmatpush1.bf16.msra.mxu0 0
    %123 = vmatprep.subr.bf16.mxu0 0
    %124 = vmatpush1.bf16.msra.mxu0 0
    %125 = vmatprep.subr.bf16.mxu0 0
    %126 = vmatpush1.bf16.msra.mxu0 0
    %127 = vmatprep.subr.bf16.mxu0 0
    %128 = vmatpush1.bf16.msra.mxu0 %v111
    %129 = vmatprep.subr.bf16.mxu0 0
    %130 = vmatpush2.bf16.msra.mxu0 0
    %131 = vmatprep.subr.bf16.mxu0 0
    %132 = vmatpush2.bf16.msra.mxu0 0
    %133 = vmatprep.subr.bf16.mxu0 0
    %134 = vmatpush2.bf16.msra.mxu0 0
    %135 = vmatprep.subr.bf16.mxu0 0
    %136 = vmatpush2.bf16.msra.mxu0 0
    %137 = vmatprep.subr.bf16.mxu0 0
    %138 = vmatpush2.bf16.msra.mxu0 0
    %139 = vmatprep.subr.bf16.mxu0 0
    %140 = vmatpush2.bf16.msra.mxu0 0
    %141 = vmatprep.subr.bf16.mxu0 0
    %142 = vmatpush2.bf16.msra.mxu0 0
    %143 = vmatprep.subr.bf16.mxu0 0
    %144 = vmatpush2.bf16.msra.mxu0 0
    %145 = vmatprep.mubr.bf16.mxu0 0
    %146 = vmatmul.mubr.bf16.gmra.mxu0 %v107
    %v147 = vpop.f32.mrf.mxu0
    %v148 = vadd.f32 0.0, %v147
    %v149 = vpop.f32.mrf.mxu0
    %v150 = vpop.f32.mrf.mxu0
    %v151 = vadd.f32 0.0, %v150
    %v152 = vpop.f32.mrf.mxu0
    %153 = vdwg.mxu0
    %v154 = vpack.c.bf16 %v151, %v148
    %vm155 = vcmask 130048
    %v157 = vsel %vm155, %v154, 0
    %v159 = vsel %vm155, %v88, 0
    %161 = vmatprep.subr.bf16.mxu0 0
    %162 = vmatpush1.bf16.xpose.msra.mxu0 0
    %163 = vmatprep.subr.bf16.mxu0 0
    %164 = vmatpush1.bf16.xpose.msra.mxu0 0
    %165 = vmatprep.subr.bf16.mxu0 0
    %166 = vmatpush1.bf16.xpose.msra.mxu0 0
    %167 = vmatprep.subr.bf16.mxu0 0
    %168 = vmatpush1.bf16.xpose.msra.mxu0 0
    %169 = vmatprep.subr.bf16.mxu0 0
    %170 = vmatpush1.bf16.xpose.msra.mxu0 0
    %171 = vmatprep.subr.bf16.mxu0 0
    %172 = vmatpush1.bf16.xpose.msra.mxu0 0
    %173 = vmatprep.subr.bf16.mxu0 0
    %174 = vmatpush1.bf16.xpose.msra.mxu0 0
    %175 = vmatprep.subr.bf16.mxu0 0
    %176 = vmatpush1.bf16.xpose.msra.mxu0 %v159
    %177 = vmatprep.subr.bf16.mxu0 0
    %178 = vmatpush2.bf16.xpose.msra.mxu0 0
    %179 = vmatprep.subr.bf16.mxu0 0
    %180 = vmatpush2.bf16.xpose.msra.mxu0 0
    %181 = vmatprep.subr.bf16.mxu0 0
    %182 = vmatpush2.bf16.xpose.msra.mxu0 0
    %183 = vmatprep.subr.bf16.mxu0 0
    %184 = vmatpush2.bf16.xpose.msra.mxu0 0
    %185 = vmatprep.subr.bf16.mxu0 0
    %186 = vmatpush2.bf16.xpose.msra.mxu0 0
    %187 = vmatprep.subr.bf16.mxu0 0
    %188 = vmatpush2.bf16.xpose.msra.mxu0 0
    %189 = vmatprep.subr.bf16.mxu0 0
    %190 = vmatpush2.bf16.xpose.msra.mxu0 0
    %191 = vmatprep.subr.bf16.mxu0 0
    %192 = vmatpush2.bf16.xpose.msra.mxu0 0
    %193 = vmatprep.mubr.bf16.mxu0 0
    %194 = vmatmul.mubr.bf16.gmra.mxu0 %v157
    %v195 = vpop.f32.mrf.mxu0
    %v196 = vadd.f32 0.0, %v195
    %v197 = vpop.f32.mrf.mxu0
    %v198 = vpop.f32.mrf.mxu0
    %v199 = vadd.f32 0.0, %v198
    %v200 = vpop.f32.mrf.mxu0
    %201 = vdwg.mxu0
    %v202 = vpack.c.bf16 %v85, %v85
    %203 = vxpose.xlu0.c.b16.start [1/8] %v202, 128
    %204 = vxpose.xlu0.c.b16.cont [2/8] 0, 128
    %205 = vxpose.xlu0.c.b16.cont [3/8] 0, 128
    %206 = vxpose.xlu0.c.b16.cont [4/8] 0, 128
    %207 = vxpose.xlu0.c.b16.cont [5/8] 0, 128
    %208 = vxpose.xlu0.c.b16.cont [6/8] 0, 128
    %209 = vxpose.xlu0.c.b16.cont [7/8] 0, 128
    %210 = vxpose.xlu0.c.b16.end [8/8] 0, 128
    %v211 = vpop.trf.xlu0
    %v212 = vpop.trf.xlu0
    %v213 = vpop.trf.xlu0
    %v214 = vpop.trf.xlu0
    %v215 = vpop.trf.xlu0
    %v216 = vpop.trf.xlu0
    %v217 = vpop.trf.xlu0
    %v218 = vpop.trf.xlu0
    %v220 = vsel %vm105, %v211, 0
    %v223 = vsel %vm109, %v202, 0
    %225 = vmatprep.subr.bf16.mxu0 0
    %226 = vmatpush1.bf16.msra.mxu0 0
    %227 = vmatprep.subr.bf16.mxu0 0
    %228 = vmatpush1.bf16.msra.mxu0 0
    %229 = vmatprep.subr.bf16.mxu0 0
    %230 = vmatpush1.bf16.msra.mxu0 0
    %231 = vmatprep.subr.bf16.mxu0 0
    %232 = vmatpush1.bf16.msra.mxu0 0
    %233 = vmatprep.subr.bf16.mxu0 0
    %234 = vmatpush1.bf16.msra.mxu0 0
    %235 = vmatprep.subr.bf16.mxu0 0
    %236 = vmatpush1.bf16.msra.mxu0 0
    %237 = vmatprep.subr.bf16.mxu0 0
    %238 = vmatpush1.bf16.msra.mxu0 0
    %239 = vmatprep.subr.bf16.mxu0 0
    %240 = vmatpush1.bf16.msra.mxu0 %v223
    %241 = vmatprep.subr.bf16.mxu0 0
    %242 = vmatpush2.bf16.msra.mxu0 0
    %243 = vmatprep.subr.bf16.mxu0 0
    %244 = vmatpush2.bf16.msra.mxu0 0
    %245 = vmatprep.subr.bf16.mxu0 0
    %246 = vmatpush2.bf16.msra.mxu0 0
    %247 = vmatprep.subr.bf16.mxu0 0
    %248 = vmatpush2.bf16.msra.mxu0 0
    %249 = vmatprep.subr.bf16.mxu0 0
    %250 = vmatpush2.bf16.msra.mxu0 0
    %251 = vmatprep.subr.bf16.mxu0 0
    %252 = vmatpush2.bf16.msra.mxu0 0
    %253 = vmatprep.subr.bf16.mxu0 0
    %254 = vmatpush2.bf16.msra.mxu0 0
    %255 = vmatprep.subr.bf16.mxu0 0
    %256 = vmatpush2.bf16.msra.mxu0 0
    %257 = vmatprep.mubr.bf16.mxu0 0
    %258 = vmatmul.mubr.bf16.gmra.mxu0 %v220
    %v259 = vpop.f32.mrf.mxu0
    %v260 = vadd.f32 0.0, %v259
    %v261 = vpop.f32.mrf.mxu0
    %v262 = vpop.f32.mrf.mxu0
    %v263 = vadd.f32 0.0, %v262
    %v264 = vpop.f32.mrf.mxu0
    %265 = vdwg.mxu0
    %v266 = vpack.c.bf16 %v263, %v260
    %v268 = vsel %vm155, %v266, 0
    %v270 = vsel %vm155, %v202, 0
    %272 = vmatprep.subr.bf16.mxu0 0
    %273 = vmatpush1.bf16.xpose.msra.mxu0 0
    %274 = vmatprep.subr.bf16.mxu0 0
    %275 = vmatpush1.bf16.xpose.msra.mxu0 0
    %276 = vmatprep.subr.bf16.mxu0 0
    %277 = vmatpush1.bf16.xpose.msra.mxu0 0
    %278 = vmatprep.subr.bf16.mxu0 0
    %279 = vmatpush1.bf16.xpose.msra.mxu0 0
    %280 = vmatprep.subr.bf16.mxu0 0
    %281 = vmatpush1.bf16.xpose.msra.mxu0 0
    %282 = vmatprep.subr.bf16.mxu0 0
    %283 = vmatpush1.bf16.xpose.msra.mxu0 0
    %284 = vmatprep.subr.bf16.mxu0 0
    %285 = vmatpush1.bf16.xpose.msra.mxu0 0
    %286 = vmatprep.subr.bf16.mxu0 0
    %287 = vmatpush1.bf16.xpose.msra.mxu0 %v270
    %288 = vmatprep.subr.bf16.mxu0 0
    %289 = vmatpush2.bf16.xpose.msra.mxu0 0
    %290 = vmatprep.subr.bf16.mxu0 0
    %291 = vmatpush2.bf16.xpose.msra.mxu0 0
    %292 = vmatprep.subr.bf16.mxu0 0
    %293 = vmatpush2.bf16.xpose.msra.mxu0 0
    %294 = vmatprep.subr.bf16.mxu0 0
    %295 = vmatpush2.bf16.xpose.msra.mxu0 0
    %296 = vmatprep.subr.bf16.mxu0 0
    %297 = vmatpush2.bf16.xpose.msra.mxu0 0
    %298 = vmatprep.subr.bf16.mxu0 0
    %299 = vmatpush2.bf16.xpose.msra.mxu0 0
    %300 = vmatprep.subr.bf16.mxu0 0
    %301 = vmatpush2.bf16.xpose.msra.mxu0 0
    %302 = vmatprep.subr.bf16.mxu0 0
    %303 = vmatpush2.bf16.xpose.msra.mxu0 0
    %304 = vmatprep.mubr.bf16.mxu0 0
    %305 = vmatmul.mubr.bf16.gmra.mxu0 %v268
    %v306 = vpop.f32.mrf.mxu0
    %v307 = vadd.f32 0.0, %v306
    %v308 = vpop.f32.mrf.mxu0
    %v309 = vpop.f32.mrf.mxu0
    %v310 = vadd.f32 0.0, %v309
    %v311 = vpop.f32.mrf.mxu0
    %312 = vdwg.mxu0
    %315 = vrot.lane.b32.xlu0 %v307, 8
    %v316 = vpop.permute.xlu0 %315
    %317 = vrot.lane.b32.xlu0 %v310, 8
    %v318 = vpop.permute.xlu0 %317
    %v321 = vsel %vm105, %v196, %v316
    %v322 = vsel %vm105, %v199, %v318
    %323 = vst.msk [vmem:[#allocation2] sm:$0xff] %vm155, %v321
    %324 = vst.msk [vmem:[#allocation2 + $0x8] sm:$0xff] %vm155, %v322
    %326 = vrot.lane.b32.xlu0 %v88, 112
    %v327 = vpop.permute.xlu0 %326
    %329 = vxpose.xlu0.c.b16.start [1/8] %v327, 128
    %330 = vxpose.xlu0.c.b16.cont [2/8] 0, 128
    %331 = vxpose.xlu0.c.b16.cont [3/8] 0, 128
    %332 = vxpose.xlu0.c.b16.cont [4/8] 0, 128
    %333 = vxpose.xlu0.c.b16.cont [5/8] 0, 128
    %334 = vxpose.xlu0.c.b16.cont [6/8] 0, 128
    %335 = vxpose.xlu0.c.b16.cont [7/8] 0, 128
    %336 = vxpose.xlu0.c.b16.end [8/8] 0, 128
    %v337 = vpop.trf.xlu0
    %v338 = vpop.trf.xlu0
    %v339 = vpop.trf.xlu0
    %v340 = vpop.trf.xlu0
    %v341 = vpop.trf.xlu0
    %v342 = vpop.trf.xlu0
    %v343 = vpop.trf.xlu0
    %v344 = vpop.trf.xlu0
    %v346 = vsel %vm105, %v337, 0
    %v349 = vsel %vm109, %v327, 0
    %351 = vmatprep.subr.bf16.mxu0 0
    %352 = vmatpush1.bf16.msra.mxu0 0
    %353 = vmatprep.subr.bf16.mxu0 0
    %354 = vmatpush1.bf16.msra.mxu0 0
    %355 = vmatprep.subr.bf16.mxu0 0
    %356 = vmatpush1.bf16.msra.mxu0 0
    %357 = vmatprep.subr.bf16.mxu0 0
    %358 = vmatpush1.bf16.msra.mxu0 0
    %359 = vmatprep.subr.bf16.mxu0 0
    %360 = vmatpush1.bf16.msra.mxu0 0
    %361 = vmatprep.subr.bf16.mxu0 0
    %362 = vmatpush1.bf16.msra.mxu0 0
    %363 = vmatprep.subr.bf16.mxu0 0
    %364 = vmatpush1.bf16.msra.mxu0 0
    %365 = vmatprep.subr.bf16.mxu0 0
    %366 = vmatpush1.bf16.msra.mxu0 %v349
    %367 = vmatprep.subr.bf16.mxu0 0
    %368 = vmatpush2.bf16.msra.mxu0 0
    %369 = vmatprep.subr.bf16.mxu0 0
    %370 = vmatpush2.bf16.msra.mxu0 0
    %371 = vmatprep.subr.bf16.mxu0 0
    %372 = vmatpush2.bf16.msra.mxu0 0
    %373 = vmatprep.subr.bf16.mxu0 0
    %374 = vmatpush2.bf16.msra.mxu0 0
    %375 = vmatprep.subr.bf16.mxu0 0
    %376 = vmatpush2.bf16.msra.mxu0 0
    %377 = vmatprep.subr.bf16.mxu0 0
    %378 = vmatpush2.bf16.msra.mxu0 0
    %379 = vmatprep.subr.bf16.mxu0 0
    %380 = vmatpush2.bf16.msra.mxu0 0
    %381 = vmatprep.subr.bf16.mxu0 0
    %382 = vmatpush2.bf16.msra.mxu0 0
    %383 = vmatprep.mubr.bf16.mxu0 0
    %384 = vmatmul.mubr.bf16.gmra.mxu0 %v346
    %v385 = vpop.f32.mrf.mxu0
    %v386 = vadd.f32 0.0, %v385
    %v387 = vpop.f32.mrf.mxu0
    %v388 = vpop.f32.mrf.mxu0
    %v389 = vadd.f32 0.0, %v388
    %v390 = vpop.f32.mrf.mxu0
    %391 = vdwg.mxu0
    %v392 = vpack.c.bf16 %v389, %v386
    %v394 = vsel %vm155, %v392, 0
    %v396 = vsel %vm155, %v327, 0
    %398 = vmatprep.subr.bf16.mxu0 0
    %399 = vmatpush1.bf16.xpose.msra.mxu0 0
    %400 = vmatprep.subr.bf16.mxu0 0
    %401 = vmatpush1.bf16.xpose.msra.mxu0 0
    %402 = vmatprep.subr.bf16.mxu0 0
    %403 = vmatpush1.bf16.xpose.msra.mxu0 0
    %404 = vmatprep.subr.bf16.mxu0 0
    %405 = vmatpush1.bf16.xpose.msra.mxu0 0
    %406 = vmatprep.subr.bf16.mxu0 0
    %407 = vmatpush1.bf16.xpose.msra.mxu0 0
    %408 = vmatprep.subr.bf16.mxu0 0
    %409 = vmatpush1.bf16.xpose.msra.mxu0 0
    %410 = vmatprep.subr.bf16.mxu0 0
    %411 = vmatpush1.bf16.xpose.msra.mxu0 0
    %412 = vmatprep.subr.bf16.mxu0 0
    %413 = vmatpush1.bf16.xpose.msra.mxu0 %v396
    %414 = vmatprep.subr.bf16.mxu0 0
    %415 = vmatpush2.bf16.xpose.msra.mxu0 0
    %416 = vmatprep.subr.bf16.mxu0 0
    %417 = vmatpush2.bf16.xpose.msra.mxu0 0
    %418 = vmatprep.subr.bf16.mxu0 0
    %419 = vmatpush2.bf16.xpose.msra.mxu0 0
    %420 = vmatprep.subr.bf16.mxu0 0
    %421 = vmatpush2.bf16.xpose.msra.mxu0 0
    %422 = vmatprep.subr.bf16.mxu0 0
    %423 = vmatpush2.bf16.xpose.msra.mxu0 0
    %424 = vmatprep.subr.bf16.mxu0 0
    %425 = vmatpush2.bf16.xpose.msra.mxu0 0
    %426 = vmatprep.subr.bf16.mxu0 0
    %427 = vmatpush2.bf16.xpose.msra.mxu0 0
    %428 = vmatprep.subr.bf16.mxu0 0
    %429 = vmatpush2.bf16.xpose.msra.mxu0 0
    %430 = vmatprep.mubr.bf16.mxu0 0
    %431 = vmatmul.mubr.bf16.gmra.mxu0 %v394
    %v432 = vpop.f32.mrf.mxu0
    %v433 = vadd.f32 0.0, %v432
    %v434 = vpop.f32.mrf.mxu0
    %v435 = vpop.f32.mrf.mxu0
    %v436 = vadd.f32 0.0, %v435
    %v437 = vpop.f32.mrf.mxu0
    %438 = vdwg.mxu0
    %440 = vrot.lane.b32.xlu0 %v202, 112
    %v441 = vpop.permute.xlu0 %440
    %443 = vxpose.xlu0.c.b16.start [1/8] %v441, 128
    %444 = vxpose.xlu0.c.b16.cont [2/8] 0, 128
    %445 = vxpose.xlu0.c.b16.cont [3/8] 0, 128
    %446 = vxpose.xlu0.c.b16.cont [4/8] 0, 128
    %447 = vxpose.xlu0.c.b16.cont [5/8] 0, 128
    %448 = vxpose.xlu0.c.b16.cont [6/8] 0, 128
    %449 = vxpose.xlu0.c.b16.cont [7/8] 0, 128
    %450 = vxpose.xlu0.c.b16.end [8/8] 0, 128
    %v451 = vpop.trf.xlu0
    %v452 = vpop.trf.xlu0
    %v453 = vpop.trf.xlu0
    %v454 = vpop.trf.xlu0
    %v455 = vpop.trf.xlu0
    %v456 = vpop.trf.xlu0
    %v457 = vpop.trf.xlu0
    %v458 = vpop.trf.xlu0
    %v460 = vsel %vm105, %v451, 0
    %v463 = vsel %vm109, %v441, 0
    %465 = vmatprep.subr.bf16.mxu0 0
    %466 = vmatpush1.bf16.msra.mxu0 0
    %467 = vmatprep.subr.bf16.mxu0 0
    %468 = vmatpush1.bf16.msra.mxu0 0
    %469 = vmatprep.subr.bf16.mxu0 0
    %470 = vmatpush1.bf16.msra.mxu0 0
    %471 = vmatprep.subr.bf16.mxu0 0
    %472 = vmatpush1.bf16.msra.mxu0 0
    %473 = vmatprep.subr.bf16.mxu0 0
    %474 = vmatpush1.bf16.msra.mxu0 0
    %475 = vmatprep.subr.bf16.mxu0 0
    %476 = vmatpush1.bf16.msra.mxu0 0
    %477 = vmatprep.subr.bf16.mxu0 0
    %478 = vmatpush1.bf16.msra.mxu0 0
    %479 = vmatprep.subr.bf16.mxu0 0
    %480 = vmatpush1.bf16.msra.mxu0 %v463
    %481 = vmatprep.subr.bf16.mxu0 0
    %482 = vmatpush2.bf16.msra.mxu0 0
    %483 = vmatprep.subr.bf16.mxu0 0
    %484 = vmatpush2.bf16.msra.mxu0 0
    %485 = vmatprep.subr.bf16.mxu0 0
    %486 = vmatpush2.bf16.msra.mxu0 0
    %487 = vmatprep.subr.bf16.mxu0 0
    %488 = vmatpush2.bf16.msra.mxu0 0
    %489 = vmatprep.subr.bf16.mxu0 0
    %490 = vmatpush2.bf16.msra.mxu0 0
    %491 = vmatprep.subr.bf16.mxu0 0
    %492 = vmatpush2.bf16.msra.mxu0 0
    %493 = vmatprep.subr.bf16.mxu0 0
    %494 = vmatpush2.bf16.msra.mxu0 0
    %495 = vmatprep.subr.bf16.mxu0 0
    %496 = vmatpush2.bf16.msra.mxu0 0
    %497 = vmatprep.mubr.bf16.mxu0 0
    %498 = vmatmul.mubr.bf16.gmra.mxu0 %v460
    %v499 = vpop.f32.mrf.mxu0
    %v500 = vadd.f32 0.0, %v499
    %v501 = vpop.f32.mrf.mxu0
    %v502 = vpop.f32.mrf.mxu0
    %v503 = vadd.f32 0.0, %v502
    %v504 = vpop.f32.mrf.mxu0
    %505 = vdwg.mxu0
    %v506 = vpack.c.bf16 %v503, %v500
    %v508 = vsel %vm155, %v506, 0
    %v510 = vsel %vm155, %v441, 0
    %512 = vmatprep.subr.bf16.mxu0 0
    %513 = vmatpush1.bf16.xpose.msra.mxu0 0
    %514 = vmatprep.subr.bf16.mxu0 0
    %515 = vmatpush1.bf16.xpose.msra.mxu0 0
    %516 = vmatprep.subr.bf16.mxu0 0
    %517 = vmatpush1.bf16.xpose.msra.mxu0 0
    %518 = vmatprep.subr.bf16.mxu0 0
    %519 = vmatpush1.bf16.xpose.msra.mxu0 0
    %520 = vmatprep.subr.bf16.mxu0 0
    %521 = vmatpush1.bf16.xpose.msra.mxu0 0
    %522 = vmatprep.subr.bf16.mxu0 0
    %523 = vmatpush1.bf16.xpose.msra.mxu0 0
    %524 = vmatprep.subr.bf16.mxu0 0
    %525 = vmatpush1.bf16.xpose.msra.mxu0 0
    %526 = vmatprep.subr.bf16.mxu0 0
    %527 = vmatpush1.bf16.xpose.msra.mxu0 %v510
    %528 = vmatprep.subr.bf16.mxu0 0
    %529 = vmatpush2.bf16.xpose.msra.mxu0 0
    %530 = vmatprep.subr.bf16.mxu0 0
    %531 = vmatpush2.bf16.xpose.msra.mxu0 0
    %532 = vmatprep.subr.bf16.mxu0 0
    %533 = vmatpush2.bf16.xpose.msra.mxu0 0
    %534 = vmatprep.subr.bf16.mxu0 0
    %535 = vmatpush2.bf16.xpose.msra.mxu0 0
    %536 = vmatprep.subr.bf16.mxu0 0
    %537 = vmatpush2.bf16.xpose.msra.mxu0 0
    %538 = vmatprep.subr.bf16.mxu0 0
    %539 = vmatpush2.bf16.xpose.msra.mxu0 0
    %540 = vmatprep.subr.bf16.mxu0 0
    %541 = vmatpush2.bf16.xpose.msra.mxu0 0
    %542 = vmatprep.subr.bf16.mxu0 0
    %543 = vmatpush2.bf16.xpose.msra.mxu0 0
    %544 = vmatprep.mubr.bf16.mxu0 0
    %545 = vmatmul.mubr.bf16.gmra.mxu0 %v508
    %v546 = vpop.f32.mrf.mxu0
    %v547 = vadd.f32 0.0, %v546
    %v548 = vpop.f32.mrf.mxu0
    %v549 = vpop.f32.mrf.mxu0
    %v550 = vadd.f32 0.0, %v549
    %v551 = vpop.f32.mrf.mxu0
    %552 = vdwg.mxu0
    %555 = vrot.lane.b32.xlu0 %v547, 8
    %v556 = vpop.permute.xlu0 %555
    %557 = vrot.lane.b32.xlu0 %v550, 8
    %v558 = vpop.permute.xlu0 %557
    %v561 = vsel %vm105, %v433, %v556
    %v562 = vsel %vm105, %v436, %v558
    %s563 = scalar_lea.vmem [#allocation2], 16
    %564 = vst.msk [vmem:[%s563] sm:$0xff] %vm155, %v561
    %565 = vst.msk [vmem:[%s563 + $0x8] sm:$0xff] %vm155, %v562
    // Predicated region
    $region14: #{tpu_custom_call.1} parent=1 // pred_check
      _
    $region15: #{tpu_custom_call.1} parent=1 // pred_check_branch
      %567 = sbr.rel (0) target = $region17
    $region16: #{tpu_custom_call.1} parent=1 // pred_region
      %s569 = ssub.s32 512, 512
      %570 = vsyncadd [#allocation3], %s569
      %s571 = sshll.u32 [#allocation2], 4
      %s572 = int_to_ptr.vmem [resolvable:$true] %s571
      %577 = dma.vmem_to_hbm [thread:$0]  %s572, 512, %s3, [#allocation3], 128, 128, 8
    $region17: #{tpu_custom_call.1} parent=1 // pred_fallthru
      _
    // Predicated region
    $region18: #{tpu_custom_call.1} parent=1 // pred_check
      _
    $region19: #{tpu_custom_call.1} parent=1 // pred_check_branch
      %579 = sbr.rel (0) target = $region21
    $region20: #{tpu_custom_call.1} parent=1 // pred_region
      %580 = dma.done [#allocation3], 512
    $region21: #{tpu_custom_call.1} parent=1 // pred_fallthru
      _
    %581 = vsyncpa [#allocation3], 1

</llo_original>
